<compile_context>
chip_gen: v5e
topology: v5e:2x2
jax: 0.10.0
libtpu: 0.0.40
codegen_flags: <defaults>
</compile_context>

<pallas_src>
import math
from functools import partial

import jax
import jax.numpy as jnp
from jax import lax
from jax.experimental import pallas as pl
from jax.experimental.pallas import tpu as pltpu


# ---------------------------------------------------------------------------
# Kernel: one batch element per grid step.
#   QKV proj (batched over 3*nh heads) -> causal softmax attention (batched
#   over nh heads) -> per-head output proj summed over heads.
# ---------------------------------------------------------------------------
def _attn_kernel(x_ref, wqkv_ref, wo_ref, o_ref, *, nh, d_head):
    """
    x_ref:    (1, L, d_model)            activations for this batch element
    wqkv_ref: (3*nh, d_model, d_head)    [Q_heads*scale | K_heads | V_heads], bf16
    wo_ref:   (nh, d_head, d_model)      per-head output-projection weight, bf16
    o_ref:    (1, L, d_model)            output
    """
    L = x_ref.shape[1]
    d_model = x_ref.shape[2]

    # --- QKV projection: ONE batched MXU einsum over all 3*nh head-weights ---
    x = x_ref[0].astype(jnp.bfloat16)                          # (L, d_model)
    xg = jnp.broadcast_to(x[None], (3 * nh, L, d_model))       # (3nh, L, d_model)
    qkv = jnp.einsum("gld,gde->gle", xg, wqkv_ref[...],
                     preferred_element_type=jnp.float32)       # (3nh, L, d_head) f32

    # Free leading-dim slices (no lane-offset value slicing).
    # 1/sqrt(d_head) already folded into the Q weights at prep time.
    q = qkv[:nh].astype(jnp.bfloat16)                          # (nh, L, dh)
    k = qkv[nh:2 * nh].astype(jnp.bfloat16)                    # (nh, L, dh)
    v = qkv[2 * nh:].astype(jnp.bfloat16)                      # (nh, L, dh)

    # --- scores, batched over heads (bf16 in, f32 accumulate) ---
    s = jnp.einsum("hqd,hkd->hqk", q, k,
                   preferred_element_type=jnp.float32)         # (nh, L, L)

    # Causal mask built once; large finite negative (no -inf -> no NaN risk
    # if a fully-masked row ever appears in future prefix/padding variants).
    row = lax.broadcasted_iota(jnp.int32, (L, L), 0)
    col = lax.broadcasted_iota(jnp.int32, (L, L), 1)
    s = jnp.where((col <= row)[None], s, jnp.float32(-1e30))

    # Softmax (exact max-subtract; denominator reciprocal on the EUP slot).
    m = jnp.max(s, axis=-1, keepdims=True)
    p = jnp.exp(s - m)
    denom = jnp.sum(p, axis=-1, keepdims=True)
    p = (p * pl.reciprocal(denom, approx=True)).astype(jnp.bfloat16)

    # --- attention output, batched over heads ---
    o = jnp.einsum("hqk,hkd->hqd", p, v,
                   preferred_element_type=jnp.float32)         # (nh, L, dh)

    # --- output projection: per-head matmul, summed over heads in-register.
    # Equivalent to merging heads (y[l, h*dh+d]) and multiplying by W_o.T,
    # but needs no transpose and no masked 64-lane scratch stores.
    outh = jnp.einsum("hld,hdm->hlm", o.astype(jnp.bfloat16), wo_ref[...],
                      preferred_element_type=jnp.float32)      # (nh, L, d_model)
    o_ref[0] = jnp.sum(outh, axis=0).astype(o_ref.dtype)       # single block store


# ---------------------------------------------------------------------------
# One-time weight preparation (outside any traced/jitted computation).
# Converts the torch-layout Linear weights into the heads-leading bf16 layout
# the kernel consumes, and folds 1/sqrt(d_head) into Q.
# ---------------------------------------------------------------------------
def prepare_attn_weights(W_qkv, W_o, d_head, compute_dtype=jnp.bfloat16):
    """W_qkv: (3H, d_model) torch layout.  W_o: (d_model, H) torch layout."""
    three_H, d_model = W_qkv.shape
    H = three_H // 3
    nh = H // d_head
    assert H % d_head == 0
    scale = 1.0 / math.sqrt(d_head)

    Wt = W_qkv.T                                   # (d_model, 3H); col = chunk*H + h*dh + d
    def heads(mat):                                # (d_model, H) -> (nh, d_model, d_head)
        return jnp.transpose(mat.reshape(d_model, nh, d_head), (1, 0, 2))

    Wq = heads(Wt[:, :H]) * scale                  # scale folded into Q weights
    Wk = heads(Wt[:, H:2 * H])
    Wv = heads(Wt[:, 2 * H:])
    W_qkv_heads = jnp.concatenate([Wq, Wk, Wv], axis=0).astype(compute_dtype)  # (3nh, dm, dh)

    # out = y @ W_o.T  with y[:, h*dh + d]  ->  Wo_heads[h, d, m] = W_o[m, h*dh + d]
    W_o_heads = jnp.transpose(W_o.reshape(d_model, nh, d_head), (1, 2, 0)).astype(compute_dtype)
    return W_qkv_heads, W_o_heads


# ---------------------------------------------------------------------------
# Attn.forward equivalent (cache=None, bidirec_prefix_len=0 -> causal path)
# ---------------------------------------------------------------------------
def attn_forward(u, W_qkv_heads, W_o_heads, *, nh, d_head):
    """u: (B, L, d_model).  Weights already packed/cast once by
    prepare_attn_weights (no per-call transposes/casts in HBM)."""
    B, L, d_model = u.shape
    return pl.pallas_call(
        partial(_attn_kernel, nh=nh, d_head=d_head),
        out_shape=jax.ShapeDtypeStruct((B, L, d_model), u.dtype),
        grid=(B,),
        in_specs=[
            pl.BlockSpec((1, L, d_model), lambda b: (b, 0, 0)),
            pl.BlockSpec((3 * nh, d_model, d_head), lambda b: (0, 0, 0)),
            pl.BlockSpec((nh, d_head, d_model), lambda b: (0, 0, 0)),
        ],
        out_specs=pl.BlockSpec((1, L, d_model), lambda b: (b, 0, 0)),
        compiler_params=pltpu.CompilerParams(
            dimension_semantics=("parallel",),          # shards over v7x's 2 TCs
            vmem_limit_bytes=32 * 1024 * 1024,
        ),
    )(u, W_qkv_heads, W_o_heads)
    # TODO(synk): at production L / d_model, tile queries flash-style with a KV
    # reduction grid axis last ("arbitrary"), keep the output lane dim a
    # multiple of 128 (pad d_model or emit a lane-dense slab), and re-derive
    # the block sizes against v7x's 64 MiB VMEM.


# ---------------------------------------------------------------------------
# Pure-JAX reference (mirrors the PyTorch module exactly; torch weight layout)
# ---------------------------------------------------------------------------
def _reference(u, W_qkv, W_o, d_head):
    B, L, d_model = u.shape
    H = W_qkv.shape[0] // 3
    nh = H // d_head
    qkv = u @ W_qkv.T
    qkv = qkv.reshape(B, L, 3, nh, d_head)
    q, k, v = (jnp.transpose(qkv[:, :, i], (0, 2, 1, 3)) for i in range(3))
    s = jnp.einsum("bhqd,bhkd->bhqk", q, k) / math.sqrt(d_head)
    mask = jnp.tril(jnp.ones((L, L), dtype=bool))
    s = jnp.where(mask, s, -jnp.inf)
    p = jax.nn.softmax(s, axis=-1)
    o = jnp.einsum("bhqk,bhkd->bhqd", p, v)
    y = jnp.transpose(o, (0, 2, 1, 3)).reshape(B, L, H)
    return y @ W_o.T


if __name__ == "__main__":
    # Module config: d_model=32, H=128, d_head=64  (H % d_head == 0, nh=2).
    B, L, d_model, d_head, H = 2, 8, 32, 64, 128
    nh = H // d_head

    key = jax.random.PRNGKey(0)
    k1, k2, k3 = jax.random.split(key, 3)
    u = jax.random.normal(k1, (B, L, d_model), dtype=jnp.float32)

    # Deterministic nn.Linear-style init in torch layout (out_features, in_features),
    # uniform(-1/sqrt(in), 1/sqrt(in)), bias=False.
    b_qkv = 1.0 / math.sqrt(d_model)
    W_qkv = jax.random.uniform(k2, (3 * H, d_model), minval=-b_qkv, maxval=b_qkv,
                               dtype=jnp.float32)
    b_o = 1.0 / math.sqrt(H)
    W_o = jax.random.uniform(k3, (d_model, H), minval=-b_o, maxval=b_o,
                             dtype=jnp.float32)

    # One-time weight prep (transpose/split/scale/bf16-cast) outside the kernel.
    W_qkv_heads, W_o_heads = jax.block_until_ready(
        prepare_attn_weights(W_qkv, W_o, d_head))

    y = attn_forward(u, W_qkv_heads, W_o_heads, nh=nh, d_head=d_head)
    jax.block_until_ready(y)
    assert y.shape == (B, L, d_model)

    y_ref = _reference(u, W_qkv, W_o, d_head)
    # Tolerance accounts for bf16 MXU operands (f32 accumulation) and the
    # approximate EUP reciprocal in the softmax denominator; this path is
    # inference-oriented.  Use f32 operands / exact divide if it ever feeds
    # gradients.
    max_err = float(jnp.max(jnp.abs(y - y_ref)))
    assert jnp.allclose(y, y_ref, atol=5e-2, rtol=5e-2), f"max abs err {max_err}"

    # TODO(synk): decode-cache (L==1) and bidirec_prefix_len>0 attention
    # branches, and the non-attention parts of Transformer (LogMels/torchaudio
    # frontend, embeddings, SinEmbed, LayerNorm, FF, residual Blocks,
    # AdaptiveCrossEntropyLoss) are not implemented; only the default causal
    # Attn path is covered here.
    print("KERNEL_OK")
</pallas_src>

<mosaic_0001>
module attributes {stable_mosaic.version = 11 : i64} {
  func.func @_attn_kernel(%arg0: i32, %arg1: memref<1x8x32xf32, #tpu.memory_space<vmem>>, %arg2: memref<6x32x64xbf16, #tpu.memory_space<vmem>>, %arg3: memref<2x64x32xbf16, #tpu.memory_space<vmem>>, %arg4: memref<1x8x32xf32, #tpu.memory_space<vmem>>) attributes {dimension_semantics = [#tpu.dimension_semantics<parallel>], iteration_bounds = array<i64: 2>, scalar_prefetch = 0 : i64, scratch_operands = 0 : i64, tpu.core_type = #tpu.core_type<tc>, window_params = [{transform_indices = @transform_0, window_bounds = array<i64: 1, 8, 32>}, {pipeline_mode = #tpu.pipeline_mode<synchronous>, transform_indices = @transform_1, window_bounds = array<i64: 6, 32, 64>}, {pipeline_mode = #tpu.pipeline_mode<synchronous>, transform_indices = @transform_2, window_bounds = array<i64: 2, 64, 32>}, {transform_indices = @transform_3, window_bounds = array<i64: 1, 8, 32>}]} {
    %c0 = arith.constant 0 : index
    %c0_0 = arith.constant 0 : index
    %c0_1 = arith.constant 0 : index
    %0 = vector.load %arg1[%c0, %c0_0, %c0_1] : memref<1x8x32xf32, #tpu.memory_space<vmem>>, vector<1x8x32xf32>
    %1 = vector.shape_cast %0 : vector<1x8x32xf32> to vector<8x32xf32>
    %2 = arith.truncf %1 : vector<8x32xf32> to vector<8x32xbf16>
    %3 = vector.shape_cast %2 : vector<8x32xbf16> to vector<1x8x32xbf16>
    %4 = vector.shape_cast %3 : vector<1x8x32xbf16> to vector<1x8x32xbf16>
    %5 = vector.broadcast %4 : vector<1x8x32xbf16> to vector<6x8x32xbf16>
    %c0_2 = arith.constant 0 : index
    %c0_3 = arith.constant 0 : index
    %c0_4 = arith.constant 0 : index
    %6 = vector.load %arg2[%c0_2, %c0_3, %c0_4] : memref<6x32x64xbf16, #tpu.memory_space<vmem>>, vector<6x32x64xbf16>
    "tpu.trace_start"() <{level = 10 : i32, message = "gld,gde->gle"}> : () -> ()
    %cst = arith.constant dense<0.000000e+00> : vector<6x8x64xf32>
    %7 = tpu.matmul %5, %6, %cst {dimension_numbers = #tpu.dot_dimension_numbers<[2], [1], [1], [2], [0, 0, 0, 1, 1, 2], [0], [0]>} : vector<6x8x32xbf16>, vector<6x32x64xbf16>, vector<6x8x64xf32> -> vector<6x8x64xf32>
    "tpu.trace_stop"() : () -> ()
    %8 = vector.extract_strided_slice %7 {offsets = [0, 0, 0], sizes = [2, 8, 64], strides = [1, 1, 1]} : vector<6x8x64xf32> to vector<2x8x64xf32>
    %9 = arith.truncf %8 : vector<2x8x64xf32> to vector<2x8x64xbf16>
    %10 = vector.extract_strided_slice %7 {offsets = [2, 0, 0], sizes = [2, 8, 64], strides = [1, 1, 1]} : vector<6x8x64xf32> to vector<2x8x64xf32>
    %11 = arith.truncf %10 : vector<2x8x64xf32> to vector<2x8x64xbf16>
    %12 = vector.extract_strided_slice %7 {offsets = [4, 0, 0], sizes = [2, 8, 64], strides = [1, 1, 1]} : vector<6x8x64xf32> to vector<2x8x64xf32>
    %13 = arith.truncf %12 : vector<2x8x64xf32> to vector<2x8x64xbf16>
    "tpu.trace_start"() <{level = 10 : i32, message = "hqd,hkd->hqk"}> : () -> ()
    %cst_5 = arith.constant dense<0.000000e+00> : vector<2x8x8xf32>
    %14 = tpu.matmul %9, %11, %cst_5 {dimension_numbers = #tpu.dot_dimension_numbers<[2], [2], [1], [1], [0, 0, 0, 1, 1, 1], [0], [0]>} : vector<2x8x64xbf16>, vector<2x8x64xbf16>, vector<2x8x8xf32> -> vector<2x8x8xf32>
    "tpu.trace_stop"() : () -> ()
    %15 = tpu.iota {dimensions = array<i32: 0>} : vector<8x8xi32>
    %16 = tpu.iota {dimensions = array<i32: 1>} : vector<8x8xi32>
    %17 = arith.cmpi sle, %16, %15 : vector<8x8xi32>
    %18 = vector.shape_cast %17 : vector<8x8xi1> to vector<1x8x8xi1>
    %cst_6 = arith.constant -1.000000e+30 : f32
    %19 = vector.shape_cast %18 : vector<1x8x8xi1> to vector<1x8x8xi1>
    %20 = vector.broadcast %19 : vector<1x8x8xi1> to vector<2x8x8xi1>
    %21 = vector.broadcast %cst_6 : f32 to vector<2x8x8xf32>
    %22 = arith.select %20, %14, %21 : vector<2x8x8xi1>, vector<2x8x8xf32>
    %cst_7 = arith.constant dense<0xFF800000> : vector<2x8xf32>
    %23 = vector.multi_reduction <maximumf>, %22, %cst_7 [2] : vector<2x8x8xf32> to vector<2x8xf32>
    %24 = vector.shape_cast %23 : vector<2x8xf32> to vector<2x8x1xf32>
    %25 = vector.broadcast %24 : vector<2x8x1xf32> to vector<2x8x8xf32>
    %26 = arith.subf %22, %25 : vector<2x8x8xf32>
    %27 = math.exp %26 : vector<2x8x8xf32>
    %cst_8 = arith.constant dense<0.000000e+00> : vector<2x8xf32>
    %28 = vector.multi_reduction <add>, %27, %cst_8 [2] : vector<2x8x8xf32> to vector<2x8xf32>
    %29 = vector.shape_cast %28 : vector<2x8xf32> to vector<2x8x1xf32>
    %30 = tpu.reciprocal %29 {approx = true} : vector<2x8x1xf32> -> vector<2x8x1xf32>
    %31 = vector.broadcast %30 : vector<2x8x1xf32> to vector<2x8x8xf32>
    %32 = arith.mulf %27, %31 : vector<2x8x8xf32>
    %33 = arith.truncf %32 : vector<2x8x8xf32> to vector<2x8x8xbf16>
    "tpu.trace_start"() <{level = 10 : i32, message = "hqk,hkd->hqd"}> : () -> ()
    %cst_9 = arith.constant dense<0.000000e+00> : vector<2x8x64xf32>
    %34 = tpu.matmul %33, %13, %cst_9 {dimension_numbers = #tpu.dot_dimension_numbers<[2], [1], [1], [2], [0, 0, 0, 1, 1, 2], [0], [0]>} : vector<2x8x8xbf16>, vector<2x8x64xbf16>, vector<2x8x64xf32> -> vector<2x8x64xf32>
    "tpu.trace_stop"() : () -> ()
    %35 = arith.truncf %34 : vector<2x8x64xf32> to vector<2x8x64xbf16>
    %c0_10 = arith.constant 0 : index
    %c0_11 = arith.constant 0 : index
    %c0_12 = arith.constant 0 : index
    %36 = vector.load %arg3[%c0_10, %c0_11, %c0_12] : memref<2x64x32xbf16, #tpu.memory_space<vmem>>, vector<2x64x32xbf16>
    "tpu.trace_start"() <{level = 10 : i32, message = "hld,hdm->hlm"}> : () -> ()
    %cst_13 = arith.constant dense<0.000000e+00> : vector<2x8x32xf32>
    %37 = tpu.matmul %35, %36, %cst_13 {dimension_numbers = #tpu.dot_dimension_numbers<[2], [1], [1], [2], [0, 0, 0, 1, 1, 2], [0], [0]>} : vector<2x8x64xbf16>, vector<2x64x32xbf16>, vector<2x8x32xf32> -> vector<2x8x32xf32>
    "tpu.trace_stop"() : () -> ()
    %cst_14 = arith.constant dense<0.000000e+00> : vector<8x32xf32>
    %38 = vector.multi_reduction <add>, %37, %cst_14 [0] : vector<2x8x32xf32> to vector<8x32xf32>
    %c0_15 = arith.constant 0 : index
    %c0_16 = arith.constant 0 : index
    %c0_17 = arith.constant 0 : index
    %39 = vector.load %arg4[%c0_15, %c0_16, %c0_17] : memref<1x8x32xf32, #tpu.memory_space<vmem>>, vector<1x8x32xf32>
    %40 = vector.shape_cast %39 : vector<1x8x32xf32> to vector<8x32xf32>
    %41 = vector.shape_cast %38 : vector<8x32xf32> to vector<1x8x32xf32>
    tpu.vector_store %arg4[%c0_15, %c0_16, %c0_17], %41 {strides = array<i32>} : memref<1x8x32xf32, #tpu.memory_space<vmem>>, vector<1x8x32xf32>,
    return
  }
  func.func @transform_0(%arg0: i32) -> (i32, i32, i32) {
    %c0_i32 = arith.constant 0 : i32
    %c0_i32_0 = arith.constant 0 : i32
    %c0_i32_1 = arith.constant 0 : i32
    return %arg0, %c0_i32, %c0_i32_0 : i32, i32, i32
  }
  func.func @transform_1(%arg0: i32) -> (i32, i32, i32) {
    %c0_i32 = arith.constant 0 : i32
    %c0_i32_0 = arith.constant 0 : i32
    %c0_i32_1 = arith.constant 0 : i32
    %c0_i32_2 = arith.constant 0 : i32
    return %c0_i32, %c0_i32_0, %c0_i32_1 : i32, i32, i32
  }
  func.func @transform_2(%arg0: i32) -> (i32, i32, i32) {
    %c0_i32 = arith.constant 0 : i32
    %c0_i32_0 = arith.constant 0 : i32
    %c0_i32_1 = arith.constant 0 : i32
    %c0_i32_2 = arith.constant 0 : i32
    return %c0_i32, %c0_i32_0, %c0_i32_1 : i32, i32, i32
  }
  func.func @transform_3(%arg0: i32) -> (i32, i32, i32) {
    %c0_i32 = arith.constant 0 : i32
    %c0_i32_0 = arith.constant 0 : i32
    %c0_i32_1 = arith.constant 0 : i32
    return %arg0, %c0_i32, %c0_i32_0 : i32, i32, i32
  }
}

</mosaic_0001>

<llo_original>
// kernel: tpu_custom_call.1
$region0: #{tpu_custom_call.1}
  #allocation0 [shape = 'u32[]', space=smem, size = 0x4, offset = 0x4, fixed_abs, tag = 'smem constant byte address 0x4 - core index']
  #allocation1 [shape = 'u32[72,128]{1,0:T(1,128)}', space=vmem, size = 0x9000, scoped, tag = 'internal scratch']
  %s0 = inlined_call_operand.hbm [shape: f32[2,8,32], index: 0, kind: input, shape index: {}]
  %s1 = inlined_call_operand.vmem [shape: bf16[6,32,64], index: 1, kind: input, shape index: {}]
  %s2 = inlined_call_operand.vmem [shape: bf16[2,64,32], index: 2, kind: input, shape index: {}]
  %s3 = inlined_call_operand.hbm [shape: f32[2,8,32], index: 3, kind: output, shape index: {}]
  %s4 = sld [smem:[#allocation0]]
  $region49: #{tpu_custom_call.1} parent=0
    _
  %s6 = ssub.s32 1, %s4
  %s7 = scalar_select 0, %s6, %s4
  $region1: #{tpu_custom_call.1} parent=0
    #allocation2 [shape = 'u8[8192]{0}', space=vmem, size = 0x2000, scoped, tag = 'input window, operand 0']
    #allocation3 [shape = 's32[2]{0}', space=sflag, size = 0x8, scoped, tag = 'scoped memory for tpu_custom_call.1']
    #allocation4 [shape = 's32[2]{0}', space=sflag, size = 0x8, scoped, tag = 'scoped memory for tpu_custom_call.1']
    #allocation5 [shape = 'u8[8192]{0}', space=vmem, size = 0x2000, scoped, tag = 'output window, operand 0']
    %8 = vsyncpa [#allocation3], 0
    %s9 = scalar_lea.sflag [#allocation3], 1
    %10 = vsyncpa %s9, 0
    %11 = vsyncpa [#allocation4], 0
    %s12 = scalar_lea.sflag [#allocation4], 1
    %13 = vsyncpa %s12, 0
    loop: start=0, step=1, limit=4
    $region2: #{tpu_custom_call.1} parent=1 // loop_pre_header
      _
    $region3: #{tpu_custom_call.1} parent=1 // loop_header
      %s15 = sphi 0, %s19
      %p16 = scmp.ge.s32.totalorder %s15, 4
      %s25 = sphi 0, %s27
      %s28 = sphi 0, %s25
      %s29 = sphi 0, %s28
      %s45 = sphi 0, %s29
      %s49 = sphi 0, %s49
      %s51 = sphi 0, %s49
      %s52 = sphi 0, %s51
      %s66 = sphi 0, %s52
      %s70 = sphi 0, %s70
      %s72 = sphi 0, %s70
      %s73 = sphi 0, %s72
      %s87 = sphi 0, %s73
      %s93 = sphi 0, %s95
      %s96 = sphi 0, %s93
      %s97 = sphi 0, %s96
      %s113 = sphi 0, %s97
    $region4: #{tpu_custom_call.1} parent=1 // loop_header_branch
      %18 = sbr.rel (%p16) target = $region8
    $region5: #{tpu_custom_call.1} parent=1 // loop_body
      %s20 = ssub.s32 %s15, 1
      %s21 = ssub.s32 %s15, 2
      %s22 = sadd.s32 %s15, 1
      %s23 = ssub.s32 %s15, %s22
      %p24 = scmp.eq.s32.totalorder %s23, 0
      %s26 = sadd.s32 %s25, 1
      %s27 = scalar_select %p24, %s25, %s26
      %p30 = pneg %p24
      %p31 = scmp.eq.s32.totalorder %s15, 1
      %p32 = por %p30, %p31
      %p33 = scmp.ne.s32.totalorder %s25, %s28
      %p34 = scmp.eq.s32.totalorder %s15, 0
      %p35 = por %p33, %p34
      %p36 = scmp.ne.s32.totalorder %s25, %s28
      %p37 = scmp.eq.s32.totalorder %s20, 1
      %p38 = por %p36, %p37
      %p39 = scmp.ne.s32.totalorder %s28, %s29
      %p40 = scmp.eq.s32.totalorder %s20, 0
      %p41 = por %p39, %p40
      %p42 = scmp.ne.s32.totalorder %s28, %s29
      %p43 = scmp.eq.s32.totalorder %s21, 1
      %p44 = por %p42, %p43
      %p46 = scmp.ne.s32.totalorder %s29, %s45
      %p47 = scmp.eq.s32.totalorder %s21, 0
      %p48 = por %p46, %p47
      %s50 = sadd.s32 %s49, 1
      %p53 = scmp.eq.s32.totalorder %s15, 1
      %p54 = scmp.ne.s32.totalorder %s49, %s51
      %p55 = scmp.eq.s32.totalorder %s15, 0
      %p56 = por %p54, %p55
      %p57 = scmp.ne.s32.totalorder %s49, %s51
      %p58 = scmp.eq.s32.totalorder %s20, 1
      %p59 = por %p57, %p58
      %p60 = scmp.ne.s32.totalorder %s51, %s52
      %p61 = scmp.eq.s32.totalorder %s20, 0
      %p62 = por %p60, %p61
      %p63 = scmp.ne.s32.totalorder %s51, %s52
      %p64 = scmp.eq.s32.totalorder %s21, 1
      %p65 = por %p63, %p64
      %p67 = scmp.ne.s32.totalorder %s52, %s66
      %p68 = scmp.eq.s32.totalorder %s21, 0
      %p69 = por %p67, %p68
      %s71 = sadd.s32 %s70, 1
      %p74 = scmp.eq.s32.totalorder %s15, 1
      %p75 = scmp.ne.s32.totalorder %s70, %s72
      %p76 = scmp.eq.s32.totalorder %s15, 0
      %p77 = por %p75, %p76
      %p78 = scmp.ne.s32.totalorder %s70, %s72
      %p79 = scmp.eq.s32.totalorder %s20, 1
      %p80 = por %p78, %p79
      %p81 = scmp.ne.s32.totalorder %s72, %s73
      %p82 = scmp.eq.s32.totalorder %s20, 0
      %p83 = por %p81, %p82
      %p84 = scmp.ne.s32.totalorder %s72, %s73
      %p85 = scmp.eq.s32.totalorder %s21, 1
      %p86 = por %p84, %p85
      %p88 = scmp.ne.s32.totalorder %s73, %s87
      %p89 = scmp.eq.s32.totalorder %s21, 0
      %p90 = por %p88, %p89
      %s91 = ssub.s32 %s15, %s22
      %p92 = scmp.eq.s32.totalorder %s91, 0
      %s94 = sadd.s32 %s93, 1
      %s95 = scalar_select %p92, %s93, %s94
      %p98 = pneg %p92
      %p99 = scmp.eq.s32.totalorder %s15, 1
      %p100 = por %p98, %p99
      %p101 = scmp.ne.s32.totalorder %s93, %s96
      %p102 = scmp.eq.s32.totalorder %s15, 0
      %p103 = por %p101, %p102
      %p104 = scmp.ne.s32.totalorder %s93, %s96
      %p105 = scmp.eq.s32.totalorder %s20, 1
      %p106 = por %p104, %p105
      %p107 = scmp.ne.s32.totalorder %s96, %s97
      %p108 = scmp.eq.s32.totalorder %s20, 0
      %p109 = por %p107, %p108
      %p110 = scmp.ne.s32.totalorder %s96, %s97
      %p111 = scmp.eq.s32.totalorder %s21, 1
      %p112 = por %p110, %p111
      %p114 = scmp.ne.s32.totalorder %s97, %s113
      %p115 = scmp.eq.s32.totalorder %s21, 0
      %p116 = por %p114, %p115
      %p117 = scmp.le.s32.totalorder 1, %s15
      %p118 = scmp.lt.s32.totalorder %s15, 3
      %p119 = pnand %p117, %p118
      %p120 = pneg %p119
      // Predicated region
      $region9: #{tpu_custom_call.1} parent=5 // pred_check
        _
      $region10: #{tpu_custom_call.1} parent=5 // pred_check_branch
        %122 = sbr.rel (%p119) target = $region12
      $region11: #{tpu_custom_call.1} parent=5 // pred_region
        %s123 = ssub.s32 %s15, 1
        // Predicated region
        $region13: #{tpu_custom_call.1} parent=11 // pred_check
          %p124 = pneg %p62
        $region14: #{tpu_custom_call.1} parent=11 // pred_check_branch
          %126 = sbr.rel (%p124) target = $region16
        $region15: #{tpu_custom_call.1} parent=11 // pred_region
          _
        $region16: #{tpu_custom_call.1} parent=11 // pred_fallthru
          _
        // Predicated region
        $region17: #{tpu_custom_call.1} parent=11 // pred_check
          %p127 = pneg %p83
        $region18: #{tpu_custom_call.1} parent=11 // pred_check_branch
          %129 = sbr.rel (%p127) target = $region20
        $region19: #{tpu_custom_call.1} parent=11 // pred_region
          _
        $region20: #{tpu_custom_call.1} parent=11 // pred_fallthru
          _
      $region12: #{tpu_custom_call.1} parent=5 // pred_fallthru
        _
      %p130 = scmp.lt.s32.totalorder %s15, 2
      // Predicated region
      $region21: #{tpu_custom_call.1} parent=5 // pred_check
        %p131 = pneg %p130
      $region22: #{tpu_custom_call.1} parent=5 // pred_check_branch
        %133 = sbr.rel (%p131) target = $region24
      $region23: #{tpu_custom_call.1} parent=5 // pred_region
        // Predicated region
        $region25: #{tpu_custom_call.1} parent=23 // pred_check
          %p134 = pneg %p35
        $region26: #{tpu_custom_call.1} parent=23 // pred_check_branch
          %136 = sbr.rel (%p134) target = $region28
        $region27: #{tpu_custom_call.1} parent=23 // pred_region
          %s137 = sand.u32 %s25, 1
          %s138 = scalar_lea.sflag [#allocation3], %s137
          %s139 = sand.u32 %s25, 1
          %s140 = smul.addr %s139, 8
          %s141 = scalar_lea.vmem [#allocation2], %s140
          %143 = vsyncadd %s138, 0
          %s144 = smul.addr %s15, 8
          %s145 = scalar_lea.hbm %s0, %s144
          %s147 = sshll.u32 %s145, 4
          %s148 = int_to_ptr.hbm [resolvable:$true] %s147
          %s149 = sshll.u32 %s141, 4
          %s150 = int_to_ptr.vmem [resolvable:$true] %s149
          %152 = dma.hbm_to_vmem [thread:$0]  %s148, 128, %s150, %s138
        $region28: #{tpu_custom_call.1} parent=23 // pred_fallthru
          _
      $region24: #{tpu_custom_call.1} parent=5 // pred_fallthru
        _
      %p153 = scmp.le.s32.totalorder 1, %s15
      %p154 = scmp.lt.s32.totalorder %s15, 3
      %p155 = pnand %p153, %p154
      %p156 = pneg %p155
      // Predicated region
      $region29: #{tpu_custom_call.1} parent=5 // pred_check
        _
      $region30: #{tpu_custom_call.1} parent=5 // pred_check_branch
        %158 = sbr.rel (%p155) target = $region32
      $region31: #{tpu_custom_call.1} parent=5 // pred_region
        %s159 = ssub.s32 %s15, 1
        %s160 = sand.u32 %s28, 1
        %s161 = scalar_lea.sflag [#allocation3], %s160
        %s162 = sand.u32 %s28, 1
        %s163 = smul.addr %s162, 8
        %s164 = scalar_lea.vmem [#allocation2], %s163
        // Predicated region
        $region33: #{tpu_custom_call.1} parent=31 // pred_check
          %p165 = pneg %p41
        $region34: #{tpu_custom_call.1} parent=31 // pred_check_branch
          %167 = sbr.rel (%p165) target = $region36
        $region35: #{tpu_custom_call.1} parent=31 // pred_region
          %169 = dma.done %s161, 128
        $region36: #{tpu_custom_call.1} parent=31 // pred_fallthru
          _
        %s170 = sand.u32 %s28, 1
        %s171 = scalar_lea.sflag [#allocation3], %s170
        %s172 = sand.u32 %s28, 1
        %s173 = smul.addr %s172, 8
        %s174 = scalar_lea.vmem [#allocation2], %s173
        %p175 = pneg %p41
        %p176 = pneg %p38
        %p177 = pneg %p62
        %p178 = pneg %p59
        %p179 = pneg %p83
        %p180 = pneg %p80
        %p181 = pneg %p109
        %p182 = pneg %p106
        %s183 = sand.u32 %s96, 1
        %s184 = scalar_lea.sflag [#allocation4], %s183
        %s185 = sand.u32 %s96, 1
        %s186 = smul.addr %s185, 8
        %s187 = scalar_lea.vmem [#allocation5], %s186
        %v189 = vld [vmem:[%s164] sm:$0xff]
        %v190 = vpack.c.bf16 %v189, %v189
        %v191 = vld [vmem:[%s1] sm:$0xf]
        %v192 = vld [vmem:[%s1 + $0x4] sm:$0xf]
        %v193 = vld [vmem:[%s1 + $0x8] sm:$0xf]
        %v194 = vld [vmem:[%s1 + $0xc] sm:$0xf]
        %v195 = vld [vmem:[%s1 + $0x10] sm:$0xf]
        %v196 = vld [vmem:[%s1 + $0x14] sm:$0xf]
        %v197 = vld [vmem:[%s1 + $0x18] sm:$0xf]
        %v198 = vld [vmem:[%s1 + $0x1c] sm:$0xf]
        %v199 = vld [vmem:[%s1 + $0x20] sm:$0xf]
        %v200 = vld [vmem:[%s1 + $0x24] sm:$0xf]
        %v201 = vld [vmem:[%s1 + $0x28] sm:$0xf]
        %v202 = vld [vmem:[%s1 + $0x2c] sm:$0xf]
        %v203 = vld [vmem:[%s1 + $0x30] sm:$0xf]
        %v204 = vld [vmem:[%s1 + $0x34] sm:$0xf]
        %v205 = vld [vmem:[%s1 + $0x38] sm:$0xf]
        %v206 = vld [vmem:[%s1 + $0x3c] sm:$0xf]
        %v207 = vld [vmem:[%s1 + $0x40] sm:$0xf]
        %v208 = vld [vmem:[%s1 + $0x44] sm:$0xf]
        %v209 = vld [vmem:[%s1 + $0x48] sm:$0xf]
        %v210 = vld [vmem:[%s1 + $0x4c] sm:$0xf]
        %v211 = vld [vmem:[%s1 + $0x50] sm:$0xf]
        %v212 = vld [vmem:[%s1 + $0x54] sm:$0xf]
        %v213 = vld [vmem:[%s1 + $0x58] sm:$0xf]
        %v214 = vld [vmem:[%s1 + $0x5c] sm:$0xf]
        %v219 = vunpack.c.l.b16 %v191
        %v220 = vunpack.c.l.b16 %v192
        %v221 = vunpack.c.l.b16 %v193
        %v222 = vunpack.c.l.b16 %v194
        %v223 = vpack.c.b16 %v220, %v219
        %v224 = vpack.c.b16 %v222, %v221
        %vm227 = vcmask 261120
        %v229 = vsel %vm227, %v190, 0
        %231 = vmatpush.bf16.msra.mxu0 0
        %232 = vmatpush.bf16.msra.mxu0 0
        %233 = vmatpush.bf16.msra.mxu0 0
        %234 = vmatpush.bf16.msra.mxu0 0
        %235 = vmatpush.bf16.msra.mxu0 0
        %236 = vmatpush.bf16.msra.mxu0 0
        %237 = vmatpush.bf16.msra.mxu0 %v224
        %238 = vmatpush.bf16.msra.mxu0 %v223
        %239 = vmatmul.bf16.gmra.mxu0 %v229
        %v240 = vpop.f32.mrf.mxu0
        %v241 = vadd.f32 0.0, %v240
        %v242 = vpop.f32.mrf.mxu0
        %243 = vdwg.mxu0
        %v248 = vunpack.c.l.b16 %v195
        %v249 = vunpack.c.l.b16 %v196
        %v250 = vunpack.c.l.b16 %v197
        %v251 = vunpack.c.l.b16 %v198
        %v252 = vpack.c.b16 %v249, %v248
        %v253 = vpack.c.b16 %v251, %v250
        %256 = vmatpush.bf16.msra.mxu0 0
        %257 = vmatpush.bf16.msra.mxu0 0
        %258 = vmatpush.bf16.msra.mxu0 0
        %259 = vmatpush.bf16.msra.mxu0 0
        %260 = vmatpush.bf16.msra.mxu0 0
        %261 = vmatpush.bf16.msra.mxu0 0
        %262 = vmatpush.bf16.msra.mxu0 %v253
        %263 = vmatpush.bf16.msra.mxu0 %v252
        %264 = vmatmul.bf16.gmra.mxu0 %v229
        %v265 = vpop.f32.mrf.mxu0
        %v266 = vadd.f32 0.0, %v265
        %v267 = vpop.f32.mrf.mxu0
        %268 = vdwg.mxu0
        %v273 = vunpack.c.l.b16 %v199
        %v274 = vunpack.c.l.b16 %v200
        %v275 = vunpack.c.l.b16 %v201
        %v276 = vunpack.c.l.b16 %v202
        %v277 = vpack.c.b16 %v274, %v273
        %v278 = vpack.c.b16 %v276, %v275
        %281 = vmatpush.bf16.msra.mxu0 0
        %282 = vmatpush.bf16.msra.mxu0 0
        %283 = vmatpush.bf16.msra.mxu0 0
        %284 = vmatpush.bf16.msra.mxu0 0
        %285 = vmatpush.bf16.msra.mxu0 0
        %286 = vmatpush.bf16.msra.mxu0 0
        %287 = vmatpush.bf16.msra.mxu0 %v278
        %288 = vmatpush.bf16.msra.mxu0 %v277
        %289 = vmatmul.bf16.gmra.mxu0 %v229
        %v290 = vpop.f32.mrf.mxu0
        %v291 = vadd.f32 0.0, %v290
        %v292 = vpop.f32.mrf.mxu0
        %293 = vdwg.mxu0
        %v298 = vunpack.c.l.b16 %v203
        %v299 = vunpack.c.l.b16 %v204
        %v300 = vunpack.c.l.b16 %v205
        %v301 = vunpack.c.l.b16 %v206
        %v302 = vpack.c.b16 %v299, %v298
        %v303 = vpack.c.b16 %v301, %v300
        %306 = vmatpush.bf16.msra.mxu0 0
        %307 = vmatpush.bf16.msra.mxu0 0
        %308 = vmatpush.bf16.msra.mxu0 0
        %309 = vmatpush.bf16.msra.mxu0 0
        %310 = vmatpush.bf16.msra.mxu0 0
        %311 = vmatpush.bf16.msra.mxu0 0
        %312 = vmatpush.bf16.msra.mxu0 %v303
        %313 = vmatpush.bf16.msra.mxu0 %v302
        %314 = vmatmul.bf16.gmra.mxu0 %v229
        %v315 = vpop.f32.mrf.mxu0
        %v316 = vadd.f32 0.0, %v315
        %v317 = vpop.f32.mrf.mxu0
        %318 = vdwg.mxu0
        %v323 = vunpack.c.l.b16 %v207
        %v324 = vunpack.c.l.b16 %v208
        %v325 = vunpack.c.l.b16 %v209
        %v326 = vunpack.c.l.b16 %v210
        %v327 = vpack.c.b16 %v324, %v323
        %v328 = vpack.c.b16 %v326, %v325
        %331 = vmatpush.bf16.msra.mxu0 0
        %332 = vmatpush.bf16.msra.mxu0 0
        %333 = vmatpush.bf16.msra.mxu0 0
        %334 = vmatpush.bf16.msra.mxu0 0
        %335 = vmatpush.bf16.msra.mxu0 0
        %336 = vmatpush.bf16.msra.mxu0 0
        %337 = vmatpush.bf16.msra.mxu0 %v328
        %338 = vmatpush.bf16.msra.mxu0 %v327
        %339 = vmatmul.bf16.gmra.mxu0 %v229
        %v340 = vpop.f32.mrf.mxu0
        %v341 = vadd.f32 0.0, %v340
        %v342 = vpop.f32.mrf.mxu0
        %343 = vdwg.mxu0
        %v348 = vunpack.c.l.b16 %v211
        %v349 = vunpack.c.l.b16 %v212
        %v350 = vunpack.c.l.b16 %v213
        %v351 = vunpack.c.l.b16 %v214
        %v352 = vpack.c.b16 %v349, %v348
        %v353 = vpack.c.b16 %v351, %v350
        %356 = vmatpush.bf16.msra.mxu0 0
        %357 = vmatpush.bf16.msra.mxu0 0
        %358 = vmatpush.bf16.msra.mxu0 0
        %359 = vmatpush.bf16.msra.mxu0 0
        %360 = vmatpush.bf16.msra.mxu0 0
        %361 = vmatpush.bf16.msra.mxu0 0
        %362 = vmatpush.bf16.msra.mxu0 %v353
        %363 = vmatpush.bf16.msra.mxu0 %v352
        %364 = vmatmul.bf16.gmra.mxu0 %v229
        %v365 = vpop.f32.mrf.mxu0
        %v366 = vadd.f32 0.0, %v365
        %v367 = vpop.f32.mrf.mxu0
        %368 = vdwg.mxu0
        %v369 = vpack.c.bf16 %v241, %v241
        %v370 = vpack.c.bf16 %v266, %v266
        %v371 = vpack.c.bf16 %v291, %v291
        %v372 = vpack.c.bf16 %v316, %v316
        %v373 = vpack.c.bf16 %v341, %v341
        %v374 = vpack.c.bf16 %v366, %v366
        %vm375 = vcmask 523264
        %v377 = vsel %vm375, %v369, 0
        %v380 = vsel %vm375, %v371, 0
        %382 = vmatpush.bf16.xpose.msra.mxu0 0
        %383 = vmatpush.bf16.xpose.msra.mxu0 0
        %384 = vmatpush.bf16.xpose.msra.mxu0 0
        %385 = vmatpush.bf16.xpose.msra.mxu0 0
        %386 = vmatpush.bf16.xpose.msra.mxu0 0
        %387 = vmatpush.bf16.xpose.msra.mxu0 0
        %388 = vmatpush.bf16.xpose.msra.mxu0 0
        %389 = vmatpush.bf16.xpose.msra.mxu0 %v380
        %390 = vmatmul.bf16.gmra.mxu0 %v377
        %v391 = vpop.f32.mrf.mxu0
        %v392 = vadd.f32 0.0, %v391
        %v393 = vpop.f32.mrf.mxu0
        %394 = vdwg.mxu0
        %v396 = vsel %vm375, %v370, 0
        %v399 = vsel %vm375, %v372, 0
        %401 = vmatpush.bf16.xpose.msra.mxu0 0
        %402 = vmatpush.bf16.xpose.msra.mxu0 0
        %403 = vmatpush.bf16.xpose.msra.mxu0 0
        %404 = vmatpush.bf16.xpose.msra.mxu0 0
        %405 = vmatpush.bf16.xpose.msra.mxu0 0
        %406 = vmatpush.bf16.xpose.msra.mxu0 0
        %407 = vmatpush.bf16.xpose.msra.mxu0 0
        %408 = vmatpush.bf16.xpose.msra.mxu0 %v399
        %409 = vmatmul.bf16.gmra.mxu0 %v396
        %v410 = vpop.f32.mrf.mxu0
        %v411 = vadd.f32 0.0, %v410
        %v412 = vpop.f32.mrf.mxu0
        %413 = vdwg.mxu0
        %v414 = vlaneseq
        %v415 = vshrl.u32 %v414, 7
        %v416 = vlaneseq
        %v417 = vand.u32 %v416, 127
        %vm418 = vcmp.le.s32.totalorder %v417, %v415
        %v419 = vsel %vm418, 1, 0
        %vm420 = vcmp.eq.s32.totalorder %v419, 1
        %v421 = vsel %vm420, %v392, -1e+30
        %v422 = vsel %vm420, %v411, -1e+30
        %vm423 = vcmask 64512
        %v424 = vsel %vm423, %v421, -inf
        %425 = vmax.xlane.f32.xlu0 %v424
        %v426 = vpop.xlane.xlu0 %425
        %v427 = vsel %vm423, %v422, -inf
        %428 = vmax.xlane.f32.xlu0 %v427
        %v429 = vpop.xlane.xlu0 %428
        %v430 = vsub.f32 %v421, %v426
        %v431 = vsub.f32 %v422, %v429
        %v432 = vmul.f32 %v430, 1.442695
        %v433 = vpow.pop %v432
        %v434 = vmul.f32 %v431, 1.442695
        %v435 = vpow.pop %v434
        %v436 = vsel %vm423, %v433, 0.0
        %437 = vadd.xlane.f32.xlu0 %v436
        %v438 = vpop.xlane.xlu0 %437
        %v439 = vsel %vm423, %v435, 0.0
        %440 = vadd.xlane.f32.xlu0 %v439
        %v441 = vpop.xlane.xlu0 %440
        %v442 = vrcp.pop %v438
        %v443 = vrcp.pop %v441
        %v444 = vmul.f32 %v433, %v442
        %v445 = vmul.f32 %v435, %v443
        %v446 = vpack.c.bf16 %v444, %v444
        %v447 = vpack.c.bf16 %v445, %v445
        %v449 = vsel %vm423, %v446, 0
        %vm451 = vcmask 1043456
        %v453 = vsel %vm451, %v373, 0
        %455 = vmatpush.bf16.msra.mxu0 0
        %456 = vmatpush.bf16.msra.mxu0 0
        %457 = vmatpush.bf16.msra.mxu0 0
        %458 = vmatpush.bf16.msra.mxu0 0
        %459 = vmatpush.bf16.msra.mxu0 0
        %460 = vmatpush.bf16.msra.mxu0 0
        %461 = vmatpush.bf16.msra.mxu0 0
        %462 = vmatpush.bf16.msra.mxu0 %v453
        %463 = vmatmul.bf16.gmra.mxu0 %v449
        %v464 = vpop.f32.mrf.mxu0
        %v465 = vadd.f32 0.0, %v464
        %v466 = vpop.f32.mrf.mxu0
        %467 = vdwg.mxu0
        %v469 = vsel %vm423, %v447, 0
        %v472 = vsel %vm451, %v374, 0
        %474 = vmatpush.bf16.msra.mxu0 0
        %475 = vmatpush.bf16.msra.mxu0 0
        %476 = vmatpush.bf16.msra.mxu0 0
        %477 = vmatpush.bf16.msra.mxu0 0
        %478 = vmatpush.bf16.msra.mxu0 0
        %479 = vmatpush.bf16.msra.mxu0 0
        %480 = vmatpush.bf16.msra.mxu0 0
        %481 = vmatpush.bf16.msra.mxu0 %v472
        %482 = vmatmul.bf16.gmra.mxu0 %v469
        %v483 = vpop.f32.mrf.mxu0
        %v484 = vadd.f32 0.0, %v483
        %v485 = vpop.f32.mrf.mxu0
        %486 = vdwg.mxu0
        %v487 = vpack.c.bf16 %v465, %v465
        %v488 = vpack.c.bf16 %v484, %v484
        %v489 = vld [vmem:[%s2] sm:$0xf]
        %v490 = vld [vmem:[%s2 + $0x4] sm:$0xf]
        %v491 = vld [vmem:[%s2 + $0x8] sm:$0xf]
        %v492 = vld [vmem:[%s2 + $0xc] sm:$0xf]
        %v493 = vld [vmem:[%s2 + $0x10] sm:$0xf]
        %v494 = vld [vmem:[%s2 + $0x14] sm:$0xf]
        %v495 = vld [vmem:[%s2 + $0x18] sm:$0xf]
        %v496 = vld [vmem:[%s2 + $0x1c] sm:$0xf]
        %v497 = vld [vmem:[%s2 + $0x20] sm:$0xf]
        %v498 = vld [vmem:[%s2 + $0x24] sm:$0xf]
        %v499 = vld [vmem:[%s2 + $0x28] sm:$0xf]
        %v500 = vld [vmem:[%s2 + $0x2c] sm:$0xf]
        %v501 = vld [vmem:[%s2 + $0x30] sm:$0xf]
        %v502 = vld [vmem:[%s2 + $0x34] sm:$0xf]
        %v503 = vld [vmem:[%s2 + $0x38] sm:$0xf]
        %v504 = vld [vmem:[%s2 + $0x3c] sm:$0xf]
        %v513 = vunpack.c.l.b16 %v489
        %v514 = vunpack.c.l.b16 %v490
        %v515 = vunpack.c.l.b16 %v491
        %v516 = vunpack.c.l.b16 %v492
        %v517 = vunpack.c.l.b16 %v493
        %v518 = vunpack.c.l.b16 %v494
        %v519 = vunpack.c.l.b16 %v495
        %v520 = vunpack.c.l.b16 %v496
        %v521 = vpack.c.b16 %v514, %v513
        %v522 = vpack.c.b16 %v516, %v515
        %v523 = vpack.c.b16 %v518, %v517
        %v524 = vpack.c.b16 %v520, %v519
        %v530 = vsel %vm375, %v487, 0
        %532 = vmatpush.bf16.msra.mxu0 0
        %533 = vmatpush.bf16.msra.mxu0 0
        %534 = vmatpush.bf16.msra.mxu0 0
        %535 = vmatpush.bf16.msra.mxu0 0
        %536 = vmatpush.bf16.msra.mxu0 %v524
        %537 = vmatpush.bf16.msra.mxu0 %v523
        %538 = vmatpush.bf16.msra.mxu0 %v522
        %539 = vmatpush.bf16.msra.mxu0 %v521
        %540 = vmatmul.bf16.gmra.mxu0 %v530
        %v541 = vpop.f32.mrf.mxu0
        %v542 = vadd.f32 0.0, %v541
        %v543 = vpop.f32.mrf.mxu0
        %544 = vdwg.mxu0
        %v553 = vunpack.c.l.b16 %v497
        %v554 = vunpack.c.l.b16 %v498
        %v555 = vunpack.c.l.b16 %v499
        %v556 = vunpack.c.l.b16 %v500
        %v557 = vunpack.c.l.b16 %v501
        %v558 = vunpack.c.l.b16 %v502
        %v559 = vunpack.c.l.b16 %v503
        %v560 = vunpack.c.l.b16 %v504
        %v561 = vpack.c.b16 %v554, %v553
        %v562 = vpack.c.b16 %v556, %v555
        %v563 = vpack.c.b16 %v558, %v557
        %v564 = vpack.c.b16 %v560, %v559
        %v570 = vsel %vm375, %v488, 0
        %572 = vmatpush.bf16.msra.mxu0 0
        %573 = vmatpush.bf16.msra.mxu0 0
        %574 = vmatpush.bf16.msra.mxu0 0
        %575 = vmatpush.bf16.msra.mxu0 0
        %576 = vmatpush.bf16.msra.mxu0 %v564
        %577 = vmatpush.bf16.msra.mxu0 %v563
        %578 = vmatpush.bf16.msra.mxu0 %v562
        %579 = vmatpush.bf16.msra.mxu0 %v561
        %580 = vmatmul.bf16.gmra.mxu0 %v570
        %v581 = vpop.f32.mrf.mxu0
        %v582 = vadd.f32 0.0, %v581
        %v583 = vpop.f32.mrf.mxu0
        %584 = vdwg.mxu0
        %v585 = vsel %vm227, %v542, 0.0
        %v586 = vsel %vm227, %v582, 0.0
        %v587 = vadd.f32 %v585, %v586
        %588 = vst.msk [vmem:[%s187] sm:$0xff] %vm227, %v587
        %s589 = sand.u32 %s96, 1
        %s590 = scalar_lea.sflag [#allocation4], %s589
        %s591 = sand.u32 %s96, 1
        %s592 = smul.addr %s591, 8
        %s593 = scalar_lea.vmem [#allocation5], %s592
        // Predicated region
        $region37: #{tpu_custom_call.1} parent=31 // pred_check
          %p594 = pneg %p106
        $region38: #{tpu_custom_call.1} parent=31 // pred_check_branch
          %596 = sbr.rel (%p594) target = $region40
        $region39: #{tpu_custom_call.1} parent=31 // pred_region
          %598 = vsyncadd %s590, 0
          %s599 = smul.addr %s20, 8
          %s600 = scalar_lea.hbm %s3, %s599
          %s602 = sshll.u32 %s593, 4
          %s603 = int_to_ptr.vmem [resolvable:$true] %s602
          %s604 = sshll.u32 %s600, 4
          %s605 = int_to_ptr.hbm [resolvable:$true] %s604
          %607 = dma.vmem_to_hbm [thread:$0]  %s603, 128, %s605, %s590
        $region40: #{tpu_custom_call.1} parent=31 // pred_fallthru
          _
      $region32: #{tpu_custom_call.1} parent=5 // pred_fallthru
        _
      %p608 = scmp.le.s32.totalorder 2, %s15
      // Predicated region
      $region41: #{tpu_custom_call.1} parent=5 // pred_check
        %p609 = pneg %p608
      $region42: #{tpu_custom_call.1} parent=5 // pred_check_branch
        %611 = sbr.rel (%p609) target = $region44
      $region43: #{tpu_custom_call.1} parent=5 // pred_region
        %s612 = ssub.s32 %s15, 2
        // Predicated region
        $region45: #{tpu_custom_call.1} parent=43 // pred_check
          %p613 = pneg %p112
        $region46: #{tpu_custom_call.1} parent=43 // pred_check_branch
          %615 = sbr.rel (%p613) target = $region48
        $region47: #{tpu_custom_call.1} parent=43 // pred_region
          %s616 = sand.u32 %s97, 1
          %s617 = scalar_lea.sflag [#allocation4], %s616
          %s618 = sand.u32 %s97, 1
          %s619 = smul.addr %s618, 8
          %s620 = scalar_lea.vmem [#allocation5], %s619
          %622 = dma.done %s617, 128
        $region48: #{tpu_custom_call.1} parent=43 // pred_fallthru
          _
      $region44: #{tpu_custom_call.1} parent=5 // pred_fallthru
        _
    $region6: #{tpu_custom_call.1} parent=1 // loop_footer
      %s19 = sadd.s32 1, %s15
    $region7: #{tpu_custom_call.1} parent=1 // loop_footer_branch
      %14 = sbr.rel target = $region3
    $region8: #{tpu_custom_call.1} parent=1 // loop_exit
      _
    %623 = vsyncpa [#allocation3], 1
    %s624 = scalar_lea.sflag [#allocation3], 1
    %625 = vsyncpa %s624, 1
    %626 = vsyncpa [#allocation4], 1
    %s627 = scalar_lea.sflag [#allocation4], 1
    %628 = vsyncpa %s627, 1

</llo_original>
